<compile_context>
chip_gen: v7x
topology: tpu7x:2x2x1
jax: 0.10.0
libtpu: 0.0.40
codegen_flags: <defaults>
</compile_context>

<pallas_src>
import functools

import jax
import jax.numpy as jnp
import numpy as np
from jax import lax
from jax.experimental import pallas as pl
from jax.experimental.pallas import tpu as pltpu


def _round_up(x, m):
    return ((x + m - 1) // m) * m


def _pick_batch_block(N, H, target_m=256):
    """Images per grid step: aim for B*H ~ target_m rows fed to the MXU,
    but keep >= 2 grid steps when N >= 2 so both v7x TensorCores get work,
    and require N % B == 0 (no ragged last block)."""
    b = max(1, min(N, max(1, target_m // max(H, 1))))
    while b > 1 and (N // b) < 2:
        b -= 1
    while N % b != 0:
        b -= 1
    return b


def _make_block_kernel(B, H, K_pad, W_Cout):
    """Conv(+bias)+BN(eval)+ReLU for B images per grid step, one matmul."""

    def kernel(x_ref, w_ref, shift_ref, o_ref):
        # x_ref:     (B, H, K_pad)     K-stacked padded rows, K_pad lanes (full vregs)
        # w_ref:     (K_pad, W*Cout)   K-stacked conv weights (BN scale folded in)
        # shift_ref: (1, W*Cout)       conv-bias + BN shift, tiled across W
        # o_ref:     (B, H, W*Cout)    lane-dense output tile
        x = x_ref[...].reshape(B * H, K_pad)            # merge leading dims (cheap)
        acc = jnp.dot(x, w_ref[...],
                      preferred_element_type=jnp.float32)   # single MXU matmul
        y = jnp.maximum(acc + shift_ref[...], 0.0)           # folded bias+BN, ReLU
        o_ref[...] = y.reshape(B, H, W_Cout).astype(o_ref.dtype)

    return kernel


def prepare_block_params(conv_w, conv_b, bn_gamma, bn_beta, bn_mean, bn_var,
                         H, W, *, eps=1e-4):
    """One-time (parameter-load-time) weight preparation.

    Returns:
      w_stack:     (K_pad, W*Cout) f32, K = kh*Wp*Cin padded to a 128 multiple
      shift_tiled: (1, W*Cout) f32
    """
    Cout, Cin, kh, kw = conv_w.shape
    assert kh == kw and kh % 2 == 1, "odd square kernel expected"
    p = kh // 2
    Wp = W + 2 * p

    # Fold eval-mode BN: scale into weights, shift as per-channel add.
    scale = bn_gamma * lax.rsqrt(bn_var + eps)                    # (Cout,)
    shift = (conv_b - bn_mean) * scale + bn_beta                  # (Cout,)
    wf = jnp.transpose(conv_w, (2, 3, 1, 0)).astype(jnp.float32) * scale  # (kh,kw,Cin,Cout)

    # Banded weights: w_band[dy, wp, ci, w, co] = wf[dy, wp-w, ci, co] if 0<=wp-w<kw
    sel = (jnp.arange(Wp)[None, :, None] ==
           (jnp.arange(W)[None, None, :] + jnp.arange(kw)[:, None, None]))
    sel = sel.astype(jnp.float32)                                 # (kw, Wp, W)
    w_band = jnp.einsum('xpw,yxio->ypiwo', sel, wf)               # (kh,Wp,Cin,W,Cout)

    K = kh * Wp * Cin
    K_pad = _round_up(K, 128)
    w_stack = w_band.reshape(K, W * Cout)
    w_stack = jnp.pad(w_stack, ((0, K_pad - K), (0, 0)))          # zero rows: no-op in dot

    shift_tiled = jnp.tile(shift.astype(jnp.float32), (W,)).reshape(1, W * Cout)
    return w_stack, shift_tiled


@functools.partial(jax.jit, static_argnames=("kh",))
def block_forward(x_nchw, w_stack, shift_tiled, *, kh):
    N, Cin, H, W = x_nchw.shape
    p = kh // 2
    Hp, Wp = H + 2 * p, W + 2 * p
    K = kh * Wp * Cin
    K_pad, W_Cout = w_stack.shape
    Cout = W_Cout // W
    assert K_pad >= K

    # --- glue (fused under jit): NCHW -> NHWC, pad, K-stack rows ---
    x = jnp.transpose(x_nchw, (0, 2, 3, 1)).astype(jnp.float32)   # (N,H,W,Cin)
    xp = jnp.pad(x, ((0, 0), (p, p), (p, p), (0, 0)))             # (N,Hp,Wp,Cin)
    x_rows = xp.reshape(N, Hp, Wp * Cin)
    # x_stack[n, h, dy*Wp*Cin + wp*Cin + ci] = xp[n, h+dy, wp, ci]
    x_stack = jnp.concatenate([x_rows[:, dy:dy + H, :] for dy in range(kh)],
                              axis=-1)                            # (N, H, K)
    x_stack = jnp.pad(x_stack, ((0, 0), (0, 0), (0, K_pad - K)))  # (N, H, K_pad)

    B = _pick_batch_block(N, H)
    grid = (N // B,)

    # VMEM budget: double-buffered in/out tiles + weights; well under v7x 64 MiB.
    footprint = 2 * 4 * (B * H * K_pad + B * H * W_Cout + K_pad * W_Cout + W_Cout)
    vmem_limit = int(min(32 * 1024 * 1024, max(4 * 1024 * 1024, 4 * footprint)))

    kernel = _make_block_kernel(B, H, K_pad, W_Cout)
    out = pl.pallas_call(
        kernel,
        out_shape=jax.ShapeDtypeStruct((N, H, W_Cout), jnp.float32),
        grid_spec=pltpu.PrefetchScalarGridSpec(
            num_scalar_prefetch=0,
            grid=grid,                                            # B images / step
            in_specs=[
                pl.BlockSpec((B, H, K_pad), lambda n: (n, 0, 0)),
                pl.BlockSpec((K_pad, W_Cout), lambda n: (0, 0)),
                pl.BlockSpec((1, W_Cout), lambda n: (0, 0)),
            ],
            out_specs=pl.BlockSpec((B, H, W_Cout), lambda n: (n, 0, 0)),
        ),
        compiler_params=pltpu.CompilerParams(
            dimension_semantics=("parallel",),
            vmem_limit_bytes=vmem_limit,
        ),
    )(x_stack, w_stack, shift_tiled)

    out = out.reshape(N, H, W, Cout)
    return jnp.transpose(out, (0, 3, 1, 2))   # back to NCHW at the module boundary


def _reference(x, conv_w, conv_b, gamma, beta, mean, var, eps=1e-4):
    y = lax.conv_general_dilated(
        x, conv_w, window_strides=(1, 1),
        padding=[(conv_w.shape[2] // 2,) * 2, (conv_w.shape[3] // 2,) * 2],
        dimension_numbers=('NCHW', 'OIHW', 'NCHW'))
    y = y + conv_b.reshape(1, -1, 1, 1)
    y = (y - mean.reshape(1, -1, 1, 1)) / jnp.sqrt(var.reshape(1, -1, 1, 1) + eps)
    y = y * gamma.reshape(1, -1, 1, 1) + beta.reshape(1, -1, 1, 1)
    return jnp.maximum(y, 0.0)


if __name__ == "__main__":
    # Block(in_ch=4, out_ch=8, kernel_size=3, bn=True, act='ReLU', bias=True)
    N, Cin, H, W = 2, 4, 16, 16
    Cout, ksz = 8, 3

    key = jax.random.PRNGKey(0)
    k0, k1, k2, k3, k4 = jax.random.split(key, 5)
    x = jax.random.normal(k0, (N, Cin, H, W), dtype=jnp.float32)
    conv_w = jax.random.normal(k1, (Cout, Cin, ksz, ksz), dtype=jnp.float32) * 0.1
    conv_b = jax.random.normal(k2, (Cout,), dtype=jnp.float32) * 0.1
    bn_gamma = 1.0 + 0.1 * jax.random.normal(k3, (Cout,), dtype=jnp.float32)
    bn_beta = 0.1 * jax.random.normal(k4, (Cout,), dtype=jnp.float32)
    bn_mean = jnp.zeros((Cout,), dtype=jnp.float32)   # fresh running stats
    bn_var = jnp.ones((Cout,), dtype=jnp.float32)

    # One-time parameter preparation (not on the per-call path).
    w_stack, shift_tiled = prepare_block_params(
        conv_w, conv_b, bn_gamma, bn_beta, bn_mean, bn_var, H, W, eps=1e-4)
    w_stack = jax.block_until_ready(w_stack)
    shift_tiled = jax.block_until_ready(shift_tiled)

    out = block_forward(x, w_stack, shift_tiled, kh=ksz)
    out = jax.block_until_ready(out)

    ref = _reference(x, conv_w, conv_b, bn_gamma, bn_beta, bn_mean, bn_var)
    np.testing.assert_allclose(np.asarray(out), np.asarray(ref),
                               rtol=1e-4, atol=1e-4)
    print("KERNEL_OK")
</pallas_src>

<mosaic_0001>
module attributes {stable_mosaic.version = 11 : i64} {
  func.func @kernel(%arg0: i32, %arg1: memref<1x16x256xf32, #tpu.memory_space<vmem>>, %arg2: memref<256x128xf32, #tpu.memory_space<vmem>>, %arg3: memref<1x128xf32, #tpu.memory_space<vmem>>, %arg4: memref<1x16x128xf32, #tpu.memory_space<vmem>>) attributes {dimension_semantics = [#tpu.dimension_semantics<parallel>], iteration_bounds = array<i64: 2>, scalar_prefetch = 0 : i64, scratch_operands = 0 : i64, tpu.core_type = #tpu.core_type<tc>, window_params = [{transform_indices = @transform_0, window_bounds = array<i64: 1, 16, 256>}, {pipeline_mode = #tpu.pipeline_mode<synchronous>, transform_indices = @transform_1, window_bounds = array<i64: 256, 128>}, {pipeline_mode = #tpu.pipeline_mode<synchronous>, transform_indices = @transform_2, window_bounds = array<i64: 1, 128>}, {transform_indices = @transform_3, window_bounds = array<i64: 1, 16, 128>}]} {
    %c0 = arith.constant 0 : index
    %c0_0 = arith.constant 0 : index
    %c0_1 = arith.constant 0 : index
    %0 = vector.load %arg1[%c0, %c0_0, %c0_1] : memref<1x16x256xf32, #tpu.memory_space<vmem>>, vector<1x16x256xf32>
    %1 = vector.shape_cast %0 : vector<1x16x256xf32> to vector<16x256xf32>
    %c0_2 = arith.constant 0 : index
    %c0_3 = arith.constant 0 : index
    %2 = vector.load %arg2[%c0_2, %c0_3] : memref<256x128xf32, #tpu.memory_space<vmem>>, vector<256x128xf32>
    %cst = arith.constant dense<0.000000e+00> : vector<16x128xf32>
    %3 = tpu.matmul %1, %2, %cst {dimension_numbers = #tpu.dot_dimension_numbers<[1], [0], [0], [1], [0, 0, 1, 1], [], []>} : vector<16x256xf32>, vector<256x128xf32>, vector<16x128xf32> -> vector<16x128xf32>
    %c0_4 = arith.constant 0 : index
    %c0_5 = arith.constant 0 : index
    %4 = vector.load %arg3[%c0_4, %c0_5] : memref<1x128xf32, #tpu.memory_space<vmem>>, vector<1x128xf32>
    %5 = vector.broadcast %4 : vector<1x128xf32> to vector<16x128xf32>
    %6 = arith.addf %3, %5 : vector<16x128xf32>
    %cst_6 = arith.constant 0.000000e+00 : f32
    %7 = vector.broadcast %cst_6 : f32 to vector<16x128xf32>
    %8 = arith.maximumf %6, %7 : vector<16x128xf32>
    %9 = vector.shape_cast %8 : vector<16x128xf32> to vector<1x16x128xf32>
    %c0_7 = arith.constant 0 : index
    %c0_8 = arith.constant 0 : index
    %c0_9 = arith.constant 0 : index
    %10 = vector.load %arg4[%c0_7, %c0_8, %c0_9] : memref<1x16x128xf32, #tpu.memory_space<vmem>>, vector<1x16x128xf32>
    tpu.vector_store %arg4[%c0_7, %c0_8, %c0_9], %9 {strides = array<i32>} : memref<1x16x128xf32, #tpu.memory_space<vmem>>, vector<1x16x128xf32>,
    return
  }
  func.func @transform_0(%arg0: i32) -> (i32, i32, i32) {
    %c0_i32 = arith.constant 0 : i32
    %c0_i32_0 = arith.constant 0 : i32
    %c0_i32_1 = arith.constant 0 : i32
    return %arg0, %c0_i32, %c0_i32_0 : i32, i32, i32
  }
  func.func @transform_1(%arg0: i32) -> (i32, i32) {
    %c0_i32 = arith.constant 0 : i32
    %c0_i32_0 = arith.constant 0 : i32
    %c0_i32_1 = arith.constant 0 : i32
    return %c0_i32, %c0_i32_0 : i32, i32
  }
  func.func @transform_2(%arg0: i32) -> (i32, i32) {
    %c0_i32 = arith.constant 0 : i32
    %c0_i32_0 = arith.constant 0 : i32
    %c0_i32_1 = arith.constant 0 : i32
    return %c0_i32, %c0_i32_0 : i32, i32
  }
  func.func @transform_3(%arg0: i32) -> (i32, i32, i32) {
    %c0_i32 = arith.constant 0 : i32
    %c0_i32_0 = arith.constant 0 : i32
    %c0_i32_1 = arith.constant 0 : i32
    return %arg0, %c0_i32, %c0_i32_0 : i32, i32, i32
  }
}

</mosaic_0001>

<llo_original>
// kernel: block_forward.1
$region0: #{block_forward.1}
  #allocation0 [shape = 'u32[]', space=smem, size = 0x4, offset = 0x4, fixed_abs, tag = 'smem constant byte address 0x4 - core index']
  #allocation1 [shape = 'u32[144,128]{1,0:T(1,128)}', space=vmem, size = 0x12000, scoped, tag = 'internal scratch']
  %s0 = inlined_call_operand.vmem [shape: f32[2,16,256], index: 0, kind: input, shape index: {}]
  %s1 = inlined_call_operand.vmem [shape: f32[256,128], index: 1, kind: input, shape index: {}]
  %s2 = inlined_call_operand.vmem [shape: f32[1,128], index: 2, kind: input, shape index: {}]
  %s3 = inlined_call_operand.vmem [shape: f32[2,16,128], index: 3, kind: output, shape index: {}]
  %s4 = sld [smem:[#allocation0]]
  $region45: #{block_forward.1} parent=0
    _
  %s6 = ssub.s32 1, %s4
  %s7 = scalar_select 0, %s6, %s4
  loop: start=0, step=1, limit=4
  $region2: #{block_forward.1} parent=0 // loop_pre_header
    _
  $region3: #{block_forward.1} parent=0 // loop_header
    %s9 = sphi 0, %s13
    %p10 = scmp.ge.s32.totalorder %s9, 4
    %s19 = sphi 0, %s21
    %s22 = sphi 0, %s19
    %s23 = sphi 0, %s22
    %s39 = sphi 0, %s23
    %s43 = sphi 0, %s43
    %s45 = sphi 0, %s43
    %s46 = sphi 0, %s45
    %s60 = sphi 0, %s46
    %s64 = sphi 0, %s64
    %s66 = sphi 0, %s64
    %s67 = sphi 0, %s66
    %s81 = sphi 0, %s67
    %s87 = sphi 0, %s89
    %s90 = sphi 0, %s87
    %s91 = sphi 0, %s90
    %s107 = sphi 0, %s91
  $region4: #{block_forward.1} parent=0 // loop_header_branch
    %12 = sbr.rel (%p10) target = $region8
  $region5: #{block_forward.1} parent=0 // loop_body
    %s14 = ssub.s32 %s9, 1
    %s15 = ssub.s32 %s9, 2
    %s16 = sadd.s32 %s9, 1
    %s17 = ssub.s32 %s9, %s16
    %p18 = scmp.eq.s32.totalorder %s17, 0
    %s20 = sadd.s32 %s19, 1
    %s21 = scalar_select %p18, %s19, %s20
    %p24 = pneg %p18
    %p25 = scmp.eq.s32.totalorder %s9, 1
    %p26 = por %p24, %p25
    %p27 = scmp.ne.s32.totalorder %s19, %s22
    %p28 = scmp.eq.s32.totalorder %s9, 0
    %p29 = por %p27, %p28
    %p30 = scmp.ne.s32.totalorder %s19, %s22
    %p31 = scmp.eq.s32.totalorder %s14, 1
    %p32 = por %p30, %p31
    %p33 = scmp.ne.s32.totalorder %s22, %s23
    %p34 = scmp.eq.s32.totalorder %s14, 0
    %p35 = por %p33, %p34
    %p36 = scmp.ne.s32.totalorder %s22, %s23
    %p37 = scmp.eq.s32.totalorder %s15, 1
    %p38 = por %p36, %p37
    %p40 = scmp.ne.s32.totalorder %s23, %s39
    %p41 = scmp.eq.s32.totalorder %s15, 0
    %p42 = por %p40, %p41
    %s44 = sadd.s32 %s43, 1
    %p47 = scmp.eq.s32.totalorder %s9, 1
    %p48 = scmp.ne.s32.totalorder %s43, %s45
    %p49 = scmp.eq.s32.totalorder %s9, 0
    %p50 = por %p48, %p49
    %p51 = scmp.ne.s32.totalorder %s43, %s45
    %p52 = scmp.eq.s32.totalorder %s14, 1
    %p53 = por %p51, %p52
    %p54 = scmp.ne.s32.totalorder %s45, %s46
    %p55 = scmp.eq.s32.totalorder %s14, 0
    %p56 = por %p54, %p55
    %p57 = scmp.ne.s32.totalorder %s45, %s46
    %p58 = scmp.eq.s32.totalorder %s15, 1
    %p59 = por %p57, %p58
    %p61 = scmp.ne.s32.totalorder %s46, %s60
    %p62 = scmp.eq.s32.totalorder %s15, 0
    %p63 = por %p61, %p62
    %s65 = sadd.s32 %s64, 1
    %p68 = scmp.eq.s32.totalorder %s9, 1
    %p69 = scmp.ne.s32.totalorder %s64, %s66
    %p70 = scmp.eq.s32.totalorder %s9, 0
    %p71 = por %p69, %p70
    %p72 = scmp.ne.s32.totalorder %s64, %s66
    %p73 = scmp.eq.s32.totalorder %s14, 1
    %p74 = por %p72, %p73
    %p75 = scmp.ne.s32.totalorder %s66, %s67
    %p76 = scmp.eq.s32.totalorder %s14, 0
    %p77 = por %p75, %p76
    %p78 = scmp.ne.s32.totalorder %s66, %s67
    %p79 = scmp.eq.s32.totalorder %s15, 1
    %p80 = por %p78, %p79
    %p82 = scmp.ne.s32.totalorder %s67, %s81
    %p83 = scmp.eq.s32.totalorder %s15, 0
    %p84 = por %p82, %p83
    %s85 = ssub.s32 %s9, %s16
    %p86 = scmp.eq.s32.totalorder %s85, 0
    %s88 = sadd.s32 %s87, 1
    %s89 = scalar_select %p86, %s87, %s88
    %p92 = pneg %p86
    %p93 = scmp.eq.s32.totalorder %s9, 1
    %p94 = por %p92, %p93
    %p95 = scmp.ne.s32.totalorder %s87, %s90
    %p96 = scmp.eq.s32.totalorder %s9, 0
    %p97 = por %p95, %p96
    %p98 = scmp.ne.s32.totalorder %s87, %s90
    %p99 = scmp.eq.s32.totalorder %s14, 1
    %p100 = por %p98, %p99
    %p101 = scmp.ne.s32.totalorder %s90, %s91
    %p102 = scmp.eq.s32.totalorder %s14, 0
    %p103 = por %p101, %p102
    %p104 = scmp.ne.s32.totalorder %s90, %s91
    %p105 = scmp.eq.s32.totalorder %s15, 1
    %p106 = por %p104, %p105
    %p108 = scmp.ne.s32.totalorder %s91, %s107
    %p109 = scmp.eq.s32.totalorder %s15, 0
    %p110 = por %p108, %p109
    %p111 = scmp.le.s32.totalorder 1, %s9
    %p112 = scmp.lt.s32.totalorder %s9, 3
    %p113 = pnand %p111, %p112
    %p114 = pneg %p113
    // Predicated region
    $region9: #{block_forward.1} parent=5 // pred_check
      _
    $region10: #{block_forward.1} parent=5 // pred_check_branch
      %116 = sbr.rel (%p113) target = $region12
    $region11: #{block_forward.1} parent=5 // pred_region
      %s117 = ssub.s32 %s9, 1
      // Predicated region
      $region13: #{block_forward.1} parent=11 // pred_check
        %p118 = pneg %p56
      $region14: #{block_forward.1} parent=11 // pred_check_branch
        %120 = sbr.rel (%p118) target = $region16
      $region15: #{block_forward.1} parent=11 // pred_region
        _
      $region16: #{block_forward.1} parent=11 // pred_fallthru
        _
      // Predicated region
      $region17: #{block_forward.1} parent=11 // pred_check
        %p121 = pneg %p77
      $region18: #{block_forward.1} parent=11 // pred_check_branch
        %123 = sbr.rel (%p121) target = $region20
      $region19: #{block_forward.1} parent=11 // pred_region
        _
      $region20: #{block_forward.1} parent=11 // pred_fallthru
        _
    $region12: #{block_forward.1} parent=5 // pred_fallthru
      _
    %p124 = scmp.lt.s32.totalorder %s9, 2
    // Predicated region
    $region21: #{block_forward.1} parent=5 // pred_check
      %p125 = pneg %p124
    $region22: #{block_forward.1} parent=5 // pred_check_branch
      %127 = sbr.rel (%p125) target = $region24
    $region23: #{block_forward.1} parent=5 // pred_region
      // Predicated region
      $region25: #{block_forward.1} parent=23 // pred_check
        %p128 = pneg %p29
      $region26: #{block_forward.1} parent=23 // pred_check_branch
        %130 = sbr.rel (%p128) target = $region28
      $region27: #{block_forward.1} parent=23 // pred_region
        %p131 = scmp.lt.s32.totalorder %s9, 1
        %s132 = scalar_select %p131, %s9, 1
        %s133 = smul.addr %s132, 4
        %s134 = smul.addr %s133, 8
        %s135 = scalar_lea.vmem %s0, %s134
      $region28: #{block_forward.1} parent=23 // pred_fallthru
        _
    $region24: #{block_forward.1} parent=5 // pred_fallthru
      _
    %p136 = scmp.le.s32.totalorder 1, %s9
    %p137 = scmp.lt.s32.totalorder %s9, 3
    %p138 = pnand %p136, %p137
    %p139 = pneg %p138
    // Predicated region
    $region29: #{block_forward.1} parent=5 // pred_check
      _
    $region30: #{block_forward.1} parent=5 // pred_check_branch
      %141 = sbr.rel (%p138) target = $region32
    $region31: #{block_forward.1} parent=5 // pred_region
      %s142 = ssub.s32 %s9, 1
      %p143 = scmp.lt.s32.totalorder %s14, 1
      %s144 = scalar_select %p143, %s14, 1
      %s145 = smul.addr %s144, 4
      %s146 = smul.addr %s145, 8
      %s147 = scalar_lea.vmem %s0, %s146
      %p148 = pneg %p35
      %p149 = pneg %p32
      %p150 = pneg %p56
      %p151 = pneg %p53
      %p152 = pneg %p77
      %p153 = pneg %p74
      %p154 = pneg %p103
      %p155 = pneg %p100
      %p156 = scmp.lt.s32.totalorder %s14, 1
      %s157 = scalar_select %p156, %s14, 1
      %s158 = smul.addr %s157, 2
      %s159 = smul.addr %s158, 8
      %s160 = scalar_lea.vmem %s3, %s159
      %p161 = scmp.lt.s32.totalorder %s14, 1
      %s162 = scalar_select %p161, %s14, 1
      %s163 = smul.addr %s162, 4
      %s164 = smul.addr %s163, 8
      %s165 = scalar_lea.vmem %s0, %s164
      %p166 = scmp.lt.s32.totalorder %s14, 1
      %s167 = scalar_select %p166, %s14, 1
      %s168 = smul.addr %s167, 2
      %s169 = smul.addr %s168, 8
      %s170 = scalar_lea.vmem %s3, %s169
      %v171 = vld [vmem:[%s165] sm:$0xff]
      %v172 = vld [vmem:[%s165 + $0x8] sm:$0xff]
      %v173 = vld [vmem:[%s165 + $0x10] sm:$0xff]
      %v174 = vld [vmem:[%s165 + $0x18] sm:$0xff]
      %v175 = vld [vmem:[%s1] sm:$0xff]
      %v176 = vld [vmem:[%s1 + $0x8] sm:$0xff]
      %v177 = vld [vmem:[%s1 + $0x10] sm:$0xff]
      %v178 = vld [vmem:[%s1 + $0x18] sm:$0xff]
      %v179 = vld [vmem:[%s1 + $0x20] sm:$0xff]
      %v180 = vld [vmem:[%s1 + $0x28] sm:$0xff]
      %v181 = vld [vmem:[%s1 + $0x30] sm:$0xff]
      %v182 = vld [vmem:[%s1 + $0x38] sm:$0xff]
      %v183 = vld [vmem:[%s1 + $0x40] sm:$0xff]
      %v184 = vld [vmem:[%s1 + $0x48] sm:$0xff]
      %v185 = vld [vmem:[%s1 + $0x50] sm:$0xff]
      %v186 = vld [vmem:[%s1 + $0x58] sm:$0xff]
      %v187 = vld [vmem:[%s1 + $0x60] sm:$0xff]
      %v188 = vld [vmem:[%s1 + $0x68] sm:$0xff]
      %v189 = vld [vmem:[%s1 + $0x70] sm:$0xff]
      %v190 = vld [vmem:[%s1 + $0x78] sm:$0xff]
      %v191 = vld [vmem:[%s1 + $0x80] sm:$0xff]
      %v192 = vld [vmem:[%s1 + $0x88] sm:$0xff]
      %v193 = vld [vmem:[%s1 + $0x90] sm:$0xff]
      %v194 = vld [vmem:[%s1 + $0x98] sm:$0xff]
      %v195 = vld [vmem:[%s1 + $0xa0] sm:$0xff]
      %v196 = vld [vmem:[%s1 + $0xa8] sm:$0xff]
      %v197 = vld [vmem:[%s1 + $0xb0] sm:$0xff]
      %v198 = vld [vmem:[%s1 + $0xb8] sm:$0xff]
      %v199 = vld [vmem:[%s1 + $0xc0] sm:$0xff]
      %v200 = vld [vmem:[%s1 + $0xc8] sm:$0xff]
      %v201 = vld [vmem:[%s1 + $0xd0] sm:$0xff]
      %v202 = vld [vmem:[%s1 + $0xd8] sm:$0xff]
      %v203 = vld [vmem:[%s1 + $0xe0] sm:$0xff]
      %v204 = vld [vmem:[%s1 + $0xe8] sm:$0xff]
      %v205 = vld [vmem:[%s1 + $0xf0] sm:$0xff]
      %v206 = vld [vmem:[%s1 + $0xf8] sm:$0xff]
      %v207 = vld [vmem:[%s2] sm:$0x1]
      %v209 = vlaneseq
      %v210 = vshrl.u32 %v209, 7
      %v211 = vsub.s32 0, %v210
      %v212 = vrot.slane %v207, %v211
      %214 = vmatprep.subr.mxu0 0.0
      %215 = vmatpush1.msra.mxu0 %v175
      %216 = vmatprep.subr.mxu0 0.0
      %217 = vmatpush1.msra.mxu0 %v176
      %218 = vmatprep.subr.mxu0 0.0
      %219 = vmatpush1.msra.mxu0 %v177
      %220 = vmatprep.subr.mxu0 0.0
      %221 = vmatpush1.msra.mxu0 %v178
      %222 = vmatprep.subr.mxu0 0.0
      %223 = vmatpush1.msra.mxu0 %v179
      %224 = vmatprep.subr.mxu0 0.0
      %225 = vmatpush1.msra.mxu0 %v180
      %226 = vmatprep.subr.mxu0 0.0
      %227 = vmatpush1.msra.mxu0 %v181
      %228 = vmatprep.subr.mxu0 0.0
      %229 = vmatpush1.msra.mxu0 %v182
      %230 = vmatprep.subr.mxu0 0.0
      %231 = vmatpush1.msra.mxu0 %v183
      %232 = vmatprep.subr.mxu0 0.0
      %233 = vmatpush1.msra.mxu0 %v184
      %234 = vmatprep.subr.mxu0 0.0
      %235 = vmatpush1.msra.mxu0 %v185
      %236 = vmatprep.subr.mxu0 0.0
      %237 = vmatpush1.msra.mxu0 %v186
      %238 = vmatprep.subr.mxu0 0.0
      %239 = vmatpush1.msra.mxu0 %v187
      %240 = vmatprep.subr.mxu0 0.0
      %241 = vmatpush1.msra.mxu0 %v188
      %242 = vmatprep.subr.mxu0 0.0
      %243 = vmatpush1.msra.mxu0 %v189
      %244 = vmatprep.subr.mxu0 0.0
      %245 = vmatpush1.msra.mxu0 %v190
      %246 = vmatprep.subr.mxu0 0.0
      %247 = vmatpush1.msra.mxu0 %v191
      %248 = vmatprep.subr.mxu0 0.0
      %249 = vmatpush1.msra.mxu0 %v192
      %250 = vmatprep.subr.mxu0 0.0
      %251 = vmatpush1.msra.mxu0 %v193
      %252 = vmatprep.subr.mxu0 0.0
      %253 = vmatpush1.msra.mxu0 %v194
      %254 = vmatprep.subr.mxu0 0.0
      %255 = vmatpush1.msra.mxu0 %v195
      %256 = vmatprep.subr.mxu0 0.0
      %257 = vmatpush1.msra.mxu0 %v196
      %258 = vmatprep.subr.mxu0 0.0
      %259 = vmatpush1.msra.mxu0 %v197
      %260 = vmatprep.subr.mxu0 0.0
      %261 = vmatpush1.msra.mxu0 %v198
      %262 = vmatprep.subr.mxu0 0.0
      %263 = vmatpush1.msra.mxu0 %v199
      %264 = vmatprep.subr.mxu0 0.0
      %265 = vmatpush1.msra.mxu0 %v200
      %266 = vmatprep.subr.mxu0 0.0
      %267 = vmatpush1.msra.mxu0 %v201
      %268 = vmatprep.subr.mxu0 0.0
      %269 = vmatpush1.msra.mxu0 %v202
      %270 = vmatprep.subr.mxu0 0.0
      %271 = vmatpush1.msra.mxu0 %v203
      %272 = vmatprep.subr.mxu0 0.0
      %273 = vmatpush1.msra.mxu0 %v204
      %274 = vmatprep.subr.mxu0 0.0
      %275 = vmatpush1.msra.mxu0 %v205
      %276 = vmatprep.subr.mxu0 0.0
      %277 = vmatpush1.msra.mxu0 %v206
      %278 = vmatprep.mubr.f32.mxu0 %v172
      %279 = vmatmul.mubr.f32.gmra.mrb[0].mxu0 %v171
      %v280 = vpop.f32.mrb[0].mxu0
      %v281 = vadd.f32 %v212, %v280
      %v282 = vpop.f32.mrb[0].mxu0
      %283 = vmatprep.mubr.f32.mxu0 %v174
      %284 = vmatmul.mubr.f32.gmra.mrb[0].mxu0 %v173
      %v285 = vpop.f32.mrb[0].mxu0
      %v286 = vadd.f32 %v212, %v285
      %v287 = vpop.f32.mrb[0].mxu0
      %288 = vdwg.mxu0
      %v289 = vmax.f32 %v281, 0.0
      %v290 = vmax.f32 %v286, 0.0
      %291 = vst [vmem:[%s170] sm:$0xff] %v289
      %292 = vst [vmem:[%s170 + $0x8] sm:$0xff] %v290
      %p293 = scmp.lt.s32.totalorder %s14, 1
      %s294 = scalar_select %p293, %s14, 1
      %s295 = smul.addr %s294, 2
      %s296 = smul.addr %s295, 8
      %s297 = scalar_lea.vmem %s3, %s296
      // Predicated region
      $region33: #{block_forward.1} parent=31 // pred_check
        %p298 = pneg %p100
      $region34: #{block_forward.1} parent=31 // pred_check_branch
        %300 = sbr.rel (%p298) target = $region36
      $region35: #{block_forward.1} parent=31 // pred_region
        _
      $region36: #{block_forward.1} parent=31 // pred_fallthru
        _
    $region32: #{block_forward.1} parent=5 // pred_fallthru
      _
    %p301 = scmp.le.s32.totalorder 2, %s9
    // Predicated region
    $region37: #{block_forward.1} parent=5 // pred_check
      %p302 = pneg %p301
    $region38: #{block_forward.1} parent=5 // pred_check_branch
      %304 = sbr.rel (%p302) target = $region40
    $region39: #{block_forward.1} parent=5 // pred_region
      %s305 = ssub.s32 %s9, 2
      // Predicated region
      $region41: #{block_forward.1} parent=39 // pred_check
        %p306 = pneg %p106
      $region42: #{block_forward.1} parent=39 // pred_check_branch
        %308 = sbr.rel (%p306) target = $region44
      $region43: #{block_forward.1} parent=39 // pred_region
        %p309 = scmp.lt.s32.totalorder %s15, 1
        %s310 = scalar_select %p309, %s15, 1
        %s311 = smul.addr %s310, 2
        %s312 = smul.addr %s311, 8
        %s313 = scalar_lea.vmem %s3, %s312
      $region44: #{block_forward.1} parent=39 // pred_fallthru
        _
    $region40: #{block_forward.1} parent=5 // pred_fallthru
      _
  $region6: #{block_forward.1} parent=0 // loop_footer
    %s13 = sadd.s32 1, %s9
  $region7: #{block_forward.1} parent=0 // loop_footer_branch
    %8 = sbr.rel target = $region3
  $region8: #{block_forward.1} parent=0 // loop_exit
    _

</llo_original>
